<compile_context>
chip_gen: v5e
topology: v5e:2x2
jax: 0.10.0
libtpu: 0.0.40
codegen_flags: <defaults>
</compile_context>

<pallas_src>
import functools
import math

import jax
import jax.numpy as jnp
from jax.experimental import pallas as pl
from jax.experimental.pallas import tpu as pltpu

LANES = 128
SUBLANES = 8


def _round_up(x, m):
    return (x + m - 1) // m * m


# --------------------------------------------------------------------------- kernel
def _patch_embed_kernel(p_ref, w_ref, b_ref, o_ref):
    """(tile_M, K) bf16 patches x (K, Dp) bf16 weight + bias -> (tile_M, Dp) out."""
    y = jnp.dot(p_ref[...], w_ref[...],
                preferred_element_type=jnp.float32)          # MXU, f32 accumulate
    o_ref[...] = (y + b_ref[...]).astype(o_ref.dtype)        # bias bcast + cast store


# --------------------------------------------------------------------------- wrapper
def image_patch_embed(image, conv_w, conv_b, *, patch_size,
                      out_dtype=jnp.bfloat16, block_m=512):
    """Pallas ImagePatchEmbed forward.

    image:  (B, C, H, W) float32 NCHW (matches the PyTorch module input)
    conv_w: (d_model, C, ph, pw)  Conv2d weight
    conv_b: (d_model,)            Conv2d bias
    returns (B, num_patches, d_model) in out_dtype (bf16 by default, f32 accumulation)
    """
    B, C, H, W = image.shape
    ph = pw = patch_size
    nH, nW = H // ph, W // pw
    P = nH * nW
    D = conv_w.shape[0]
    K = C * ph * pw
    M = B * P

    # im2col producer: ONE reshape/transpose/cast pass -> (B*P, K) bf16 patch rows
    # flattened in (c, kh, kw) order.  With allow_input_fusion this fuses into the
    # kernel's input DMA instead of materializing in HBM.
    x = image.reshape(B, C, nH, ph, nW, pw)
    x = x.transpose(0, 2, 4, 1, 3, 5)                    # (B, nH, nW, C, ph, pw)
    patches = x.reshape(M, K).astype(jnp.bfloat16)

    # Flattened (B, P) -> one large, sublane-aligned M axis tiled by the grid.
    M_sub = _round_up(M, SUBLANES)
    tile_m = min(block_m, M_sub)
    M_pad = _round_up(M, tile_m)
    if M_pad != M:
        patches = jnp.pad(patches, ((0, M_pad - M), (0, 0)))

    # Conv2d(k=stride=patch) weight as a (K, D) matmul operand, same (c,kh,kw) order;
    # lane-dense: pad the feature dim to a multiple of 128 lanes (no-op at d_model=128).
    w = conv_w.transpose(1, 2, 3, 0).reshape(K, D)
    b = conv_b
    Dp = _round_up(D, LANES)
    if Dp != D:
        w = jnp.pad(w, ((0, 0), (0, Dp - D)))
        b = jnp.pad(b, (0, Dp - D))
    w = w.astype(jnp.bfloat16)
    b = b.reshape(1, Dp).astype(jnp.float32)

    grid_m = M_pad // tile_m
    out_itemsize = jnp.dtype(out_dtype).itemsize
    cost = pl.CostEstimate(
        flops=2 * M_pad * K * Dp,
        transcendentals=0,
        bytes_accessed=M_pad * K * 2 + K * Dp * 2 + Dp * 4 + M_pad * Dp * out_itemsize,
    )

    out = pl.pallas_call(
        _patch_embed_kernel,
        out_shape=jax.ShapeDtypeStruct((M_pad, Dp), out_dtype),
        grid=(grid_m,),
        in_specs=[
            pl.BlockSpec((tile_m, K), lambda i: (i, 0)),   # M-tile of patch rows
            pl.BlockSpec((K, Dp), lambda i: (0, 0)),       # weight (constant block)
            pl.BlockSpec((1, Dp), lambda i: (0, 0)),       # bias   (constant block)
        ],
        out_specs=pl.BlockSpec((tile_m, Dp), lambda i: (i, 0)),
        compiler_params=pltpu.CompilerParams(
            dimension_semantics=("parallel",),             # split M tiles across TCs
            allow_input_fusion=[True, False, False],       # fuse im2col into input DMA
        ),
        cost_estimate=cost,
    )(patches, w, b)

    if M_pad != M:
        out = out[:M]
    if Dp != D:
        # TODO(synk): for d_model % 128 != 0 downstream should consume the padded
        # (., Dp) layout instead of paying this extra full pass over the output.
        out = out[:, :D]
    return out.reshape(B, P, D)


# --------------------------------------------------------------------------- main
if __name__ == "__main__":
    B, C = 2, 3
    img_size, patch_size, d_model = 32, 16, 128    # small spatial size, default d_model

    key = jax.random.PRNGKey(0)
    k_img, k_w, k_b = jax.random.split(key, 3)

    image = jax.random.normal(k_img, (B, C, img_size, img_size), dtype=jnp.float32)
    fan_in = C * patch_size * patch_size
    bound = 1.0 / math.sqrt(fan_in)
    conv_w = jax.random.uniform(k_w, (d_model, C, patch_size, patch_size),
                                minval=-bound, maxval=bound, dtype=jnp.float32)
    conv_b = jax.random.uniform(k_b, (d_model,), minval=-bound, maxval=bound,
                                dtype=jnp.float32)

    fwd = jax.jit(functools.partial(image_patch_embed, patch_size=patch_size))
    out = fwd(image, conv_w, conv_b)
    jax.block_until_ready(out)

    num_patches = (img_size // patch_size) ** 2
    assert out.shape == (B, num_patches, d_model), out.shape
    assert out.dtype == jnp.bfloat16, out.dtype

    # references
    xr = image.reshape(B, C, img_size // patch_size, patch_size,
                       img_size // patch_size, patch_size)
    xr = xr.transpose(0, 2, 4, 1, 3, 5).reshape(B, num_patches, fan_in)
    wr = conv_w.transpose(1, 2, 3, 0).reshape(fan_in, d_model)

    # (a) matched precision: bf16 operands, f32 accumulation (what the MXU computes)
    ref_bf16 = jnp.einsum("bpk,kd->bpd",
                          xr.astype(jnp.bfloat16), wr.astype(jnp.bfloat16),
                          preferred_element_type=jnp.float32) + conv_b[None, None, :]
    # (b) full f32 reference == the PyTorch f32 Conv2d math
    ref_f32 = jnp.einsum("bpk,kd->bpd", xr, wr,
                         precision=jax.lax.Precision.HIGHEST) + conv_b[None, None, :]

    out_f32 = out.astype(jnp.float32)
    err_matched = float(jnp.max(jnp.abs(out_f32 - ref_bf16)))
    err_full = float(jnp.max(jnp.abs(out_f32 - ref_f32)))
    assert err_matched < 2e-2, err_matched     # only the bf16 output rounding
    assert err_full < 5e-2, err_full           # bf16-in / f32-acc / bf16-out vs f32 conv

    print("KERNEL_OK")
</pallas_src>

<mosaic_0001>
module attributes {stable_mosaic.version = 11 : i64} {
  func.func @_patch_embed_kernel(%arg0: i32, %arg1: memref<8x768xbf16, #tpu.memory_space<vmem>>, %arg2: memref<768x128xbf16, #tpu.memory_space<vmem>>, %arg3: memref<1x128xf32, #tpu.memory_space<vmem>>, %arg4: memref<8x128xbf16, #tpu.memory_space<vmem>>) attributes {dimension_semantics = [#tpu.dimension_semantics<parallel>], iteration_bounds = array<i64: 1>, scalar_prefetch = 0 : i64, scratch_operands = 0 : i64, tpu.core_type = #tpu.core_type<tc>, window_params = [{transform_indices = @transform_0, window_bounds = array<i64: 8, 768>}, {pipeline_mode = #tpu.pipeline_mode<synchronous>, transform_indices = @transform_1, window_bounds = array<i64: 768, 128>}, {pipeline_mode = #tpu.pipeline_mode<synchronous>, transform_indices = @transform_2, window_bounds = array<i64: 1, 128>}, {transform_indices = @transform_3, window_bounds = array<i64: 8, 128>}]} {
    %c0 = arith.constant 0 : index
    %c0_0 = arith.constant 0 : index
    %0 = vector.load %arg1[%c0, %c0_0] : memref<8x768xbf16, #tpu.memory_space<vmem>>, vector<8x768xbf16>
    %c0_1 = arith.constant 0 : index
    %c0_2 = arith.constant 0 : index
    %1 = vector.load %arg2[%c0_1, %c0_2] : memref<768x128xbf16, #tpu.memory_space<vmem>>, vector<768x128xbf16>
    %cst = arith.constant dense<0.000000e+00> : vector<8x128xf32>
    %2 = tpu.matmul %0, %1, %cst {dimension_numbers = #tpu.dot_dimension_numbers<[1], [0], [0], [1], [0, 0, 1, 1], [], []>} : vector<8x768xbf16>, vector<768x128xbf16>, vector<8x128xf32> -> vector<8x128xf32>
    %c0_3 = arith.constant 0 : index
    %c0_4 = arith.constant 0 : index
    %3 = vector.load %arg3[%c0_3, %c0_4] : memref<1x128xf32, #tpu.memory_space<vmem>>, vector<1x128xf32>
    %4 = vector.broadcast %3 : vector<1x128xf32> to vector<8x128xf32>
    %5 = arith.addf %2, %4 : vector<8x128xf32>
    %6 = arith.truncf %5 : vector<8x128xf32> to vector<8x128xbf16>
    %c0_5 = arith.constant 0 : index
    %c0_6 = arith.constant 0 : index
    %7 = vector.load %arg4[%c0_5, %c0_6] : memref<8x128xbf16, #tpu.memory_space<vmem>>, vector<8x128xbf16>
    tpu.vector_store %arg4[%c0_5, %c0_6], %6 {strides = array<i32>} : memref<8x128xbf16, #tpu.memory_space<vmem>>, vector<8x128xbf16>,
    return
  }
  func.func @transform_0(%arg0: i32) -> (i32, i32) {
    %c0_i32 = arith.constant 0 : i32
    %c0_i32_0 = arith.constant 0 : i32
    return %arg0, %c0_i32 : i32, i32
  }
  func.func @transform_1(%arg0: i32) -> (i32, i32) {
    %c0_i32 = arith.constant 0 : i32
    %c0_i32_0 = arith.constant 0 : i32
    %c0_i32_1 = arith.constant 0 : i32
    return %c0_i32, %c0_i32_0 : i32, i32
  }
  func.func @transform_2(%arg0: i32) -> (i32, i32) {
    %c0_i32 = arith.constant 0 : i32
    %c0_i32_0 = arith.constant 0 : i32
    %c0_i32_1 = arith.constant 0 : i32
    return %c0_i32, %c0_i32_0 : i32, i32
  }
  func.func @transform_3(%arg0: i32) -> (i32, i32) {
    %c0_i32 = arith.constant 0 : i32
    %c0_i32_0 = arith.constant 0 : i32
    return %arg0, %c0_i32 : i32, i32
  }
}

</mosaic_0001>

<llo_original>
// kernel: image_patch_embed.1
$region0: #{image_patch_embed.1}
  #allocation0 [shape = 'u32[]', space=smem, size = 0x4, offset = 0x4, fixed_abs, tag = 'smem constant byte address 0x4 - core index']
  #allocation1 [shape = 'u32[72,128]{1,0:T(1,128)}', space=vmem, size = 0x9000, scoped, tag = 'internal scratch']
  %s0 = inlined_call_operand.vmem [shape: bf16[8,768], index: 0, kind: input, shape index: {}]
  %s1 = inlined_call_operand.vmem [shape: bf16[768,128], index: 1, kind: input, shape index: {}]
  %s2 = inlined_call_operand.vmem [shape: f32[1,128], index: 2, kind: input, shape index: {}]
  %s3 = inlined_call_operand.hbm [shape: bf16[8,128], index: 3, kind: output, shape index: {}]
  %s4 = sld [smem:[#allocation0]]
  $region22: #{image_patch_embed.1} parent=0
    _
  %s6 = ssub.s32 1, %s4
  %s7 = scalar_select 0, %s6, %s4
  $region1: #{image_patch_embed.1} parent=0
    #allocation2 [shape = 'u8[2048]{0}', space=vmem, size = 0x800, scoped, tag = 'output window, operand 0, single buffered']
    #allocation3 [shape = 's32[1]{0}', space=sflag, size = 0x4, scoped, tag = 'scoped memory for image_patch_embed.1']
    %8 = vsyncpa [#allocation3], 0
    // Predicated region
    $region2: #{image_patch_embed.1} parent=1 // pred_check
      _
    $region3: #{image_patch_embed.1} parent=1 // pred_check_branch
      %10 = sbr.rel (0) target = $region5
    $region4: #{image_patch_embed.1} parent=1 // pred_region
      _
    $region5: #{image_patch_embed.1} parent=1 // pred_fallthru
      _
    // Predicated region
    $region6: #{image_patch_embed.1} parent=1 // pred_check
      _
    $region7: #{image_patch_embed.1} parent=1 // pred_check_branch
      %12 = sbr.rel (0) target = $region9
    $region8: #{image_patch_embed.1} parent=1 // pred_region
      _
    $region9: #{image_patch_embed.1} parent=1 // pred_fallthru
      _
    // Predicated region
    $region10: #{image_patch_embed.1} parent=1 // pred_check
      _
    $region11: #{image_patch_embed.1} parent=1 // pred_check_branch
      %14 = sbr.rel (0) target = $region13
    $region12: #{image_patch_embed.1} parent=1 // pred_region
      _
    $region13: #{image_patch_embed.1} parent=1 // pred_fallthru
      _
    %v15 = vld [vmem:[%s0] sm:$0xff]
    %v16 = vld [vmem:[%s0 + $0x8] sm:$0xff]
    %v17 = vld [vmem:[%s0 + $0x10] sm:$0xff]
    %v18 = vld [vmem:[%s1] sm:$0xf]
    %v19 = vld [vmem:[%s1 + $0x4] sm:$0xf]
    %v20 = vld [vmem:[%s1 + $0x8] sm:$0xf]
    %v21 = vld [vmem:[%s1 + $0xc] sm:$0xf]
    %v22 = vld [vmem:[%s1 + $0x10] sm:$0xf]
    %v23 = vld [vmem:[%s1 + $0x14] sm:$0xf]
    %v24 = vld [vmem:[%s1 + $0x18] sm:$0xf]
    %v25 = vld [vmem:[%s1 + $0x1c] sm:$0xf]
    %v26 = vld [vmem:[%s1 + $0x20] sm:$0xf]
    %v27 = vld [vmem:[%s1 + $0x24] sm:$0xf]
    %v28 = vld [vmem:[%s1 + $0x28] sm:$0xf]
    %v29 = vld [vmem:[%s1 + $0x2c] sm:$0xf]
    %v30 = vld [vmem:[%s1 + $0x30] sm:$0xf]
    %v31 = vld [vmem:[%s1 + $0x34] sm:$0xf]
    %v32 = vld [vmem:[%s1 + $0x38] sm:$0xf]
    %v33 = vld [vmem:[%s1 + $0x3c] sm:$0xf]
    %v34 = vld [vmem:[%s1 + $0x40] sm:$0xf]
    %v35 = vld [vmem:[%s1 + $0x44] sm:$0xf]
    %v36 = vld [vmem:[%s1 + $0x48] sm:$0xf]
    %v37 = vld [vmem:[%s1 + $0x4c] sm:$0xf]
    %v38 = vld [vmem:[%s1 + $0x50] sm:$0xf]
    %v39 = vld [vmem:[%s1 + $0x54] sm:$0xf]
    %v40 = vld [vmem:[%s1 + $0x58] sm:$0xf]
    %v41 = vld [vmem:[%s1 + $0x5c] sm:$0xf]
    %v42 = vld [vmem:[%s1 + $0x60] sm:$0xf]
    %v43 = vld [vmem:[%s1 + $0x64] sm:$0xf]
    %v44 = vld [vmem:[%s1 + $0x68] sm:$0xf]
    %v45 = vld [vmem:[%s1 + $0x6c] sm:$0xf]
    %v46 = vld [vmem:[%s1 + $0x70] sm:$0xf]
    %v47 = vld [vmem:[%s1 + $0x74] sm:$0xf]
    %v48 = vld [vmem:[%s1 + $0x78] sm:$0xf]
    %v49 = vld [vmem:[%s1 + $0x7c] sm:$0xf]
    %v50 = vld [vmem:[%s1 + $0x80] sm:$0xf]
    %v51 = vld [vmem:[%s1 + $0x84] sm:$0xf]
    %v52 = vld [vmem:[%s1 + $0x88] sm:$0xf]
    %v53 = vld [vmem:[%s1 + $0x8c] sm:$0xf]
    %v54 = vld [vmem:[%s1 + $0x90] sm:$0xf]
    %v55 = vld [vmem:[%s1 + $0x94] sm:$0xf]
    %v56 = vld [vmem:[%s1 + $0x98] sm:$0xf]
    %v57 = vld [vmem:[%s1 + $0x9c] sm:$0xf]
    %v58 = vld [vmem:[%s1 + $0xa0] sm:$0xf]
    %v59 = vld [vmem:[%s1 + $0xa4] sm:$0xf]
    %v60 = vld [vmem:[%s1 + $0xa8] sm:$0xf]
    %v61 = vld [vmem:[%s1 + $0xac] sm:$0xf]
    %v62 = vld [vmem:[%s1 + $0xb0] sm:$0xf]
    %v63 = vld [vmem:[%s1 + $0xb4] sm:$0xf]
    %v64 = vld [vmem:[%s1 + $0xb8] sm:$0xf]
    %v65 = vld [vmem:[%s1 + $0xbc] sm:$0xf]
    %v66 = vld [vmem:[%s1 + $0xc0] sm:$0xf]
    %v67 = vld [vmem:[%s1 + $0xc4] sm:$0xf]
    %v68 = vld [vmem:[%s1 + $0xc8] sm:$0xf]
    %v69 = vld [vmem:[%s1 + $0xcc] sm:$0xf]
    %v70 = vld [vmem:[%s1 + $0xd0] sm:$0xf]
    %v71 = vld [vmem:[%s1 + $0xd4] sm:$0xf]
    %v72 = vld [vmem:[%s1 + $0xd8] sm:$0xf]
    %v73 = vld [vmem:[%s1 + $0xdc] sm:$0xf]
    %v74 = vld [vmem:[%s1 + $0xe0] sm:$0xf]
    %v75 = vld [vmem:[%s1 + $0xe4] sm:$0xf]
    %v76 = vld [vmem:[%s1 + $0xe8] sm:$0xf]
    %v77 = vld [vmem:[%s1 + $0xec] sm:$0xf]
    %v78 = vld [vmem:[%s1 + $0xf0] sm:$0xf]
    %v79 = vld [vmem:[%s1 + $0xf4] sm:$0xf]
    %v80 = vld [vmem:[%s1 + $0xf8] sm:$0xf]
    %v81 = vld [vmem:[%s1 + $0xfc] sm:$0xf]
    %v82 = vld [vmem:[%s1 + $0x100] sm:$0xf]
    %v83 = vld [vmem:[%s1 + $0x104] sm:$0xf]
    %v84 = vld [vmem:[%s1 + $0x108] sm:$0xf]
    %v85 = vld [vmem:[%s1 + $0x10c] sm:$0xf]
    %v86 = vld [vmem:[%s1 + $0x110] sm:$0xf]
    %v87 = vld [vmem:[%s1 + $0x114] sm:$0xf]
    %v88 = vld [vmem:[%s1 + $0x118] sm:$0xf]
    %v89 = vld [vmem:[%s1 + $0x11c] sm:$0xf]
    %v90 = vld [vmem:[%s1 + $0x120] sm:$0xf]
    %v91 = vld [vmem:[%s1 + $0x124] sm:$0xf]
    %v92 = vld [vmem:[%s1 + $0x128] sm:$0xf]
    %v93 = vld [vmem:[%s1 + $0x12c] sm:$0xf]
    %v94 = vld [vmem:[%s1 + $0x130] sm:$0xf]
    %v95 = vld [vmem:[%s1 + $0x134] sm:$0xf]
    %v96 = vld [vmem:[%s1 + $0x138] sm:$0xf]
    %v97 = vld [vmem:[%s1 + $0x13c] sm:$0xf]
    %v98 = vld [vmem:[%s1 + $0x140] sm:$0xf]
    %v99 = vld [vmem:[%s1 + $0x144] sm:$0xf]
    %v100 = vld [vmem:[%s1 + $0x148] sm:$0xf]
    %v101 = vld [vmem:[%s1 + $0x14c] sm:$0xf]
    %v102 = vld [vmem:[%s1 + $0x150] sm:$0xf]
    %v103 = vld [vmem:[%s1 + $0x154] sm:$0xf]
    %v104 = vld [vmem:[%s1 + $0x158] sm:$0xf]
    %v105 = vld [vmem:[%s1 + $0x15c] sm:$0xf]
    %v106 = vld [vmem:[%s1 + $0x160] sm:$0xf]
    %v107 = vld [vmem:[%s1 + $0x164] sm:$0xf]
    %v108 = vld [vmem:[%s1 + $0x168] sm:$0xf]
    %v109 = vld [vmem:[%s1 + $0x16c] sm:$0xf]
    %v110 = vld [vmem:[%s1 + $0x170] sm:$0xf]
    %v111 = vld [vmem:[%s1 + $0x174] sm:$0xf]
    %v112 = vld [vmem:[%s1 + $0x178] sm:$0xf]
    %v113 = vld [vmem:[%s1 + $0x17c] sm:$0xf]
    %v114 = vld [vmem:[%s2] sm:$0x1]
    %v116 = vperm.slane %v114, 0
    %v121 = vunpack.c.l.b16 %v15
    %v122 = vunpack.c.h.b16 %v15
    %v123 = vunpack.c.l.b16 %v16
    %v124 = vunpack.c.h.b16 %v16
    %v125 = vunpack.c.l.b16 %v17
    %v126 = vunpack.c.h.b16 %v17
    %v127 = vpack.c.b16 %v121, %v121
    %v128 = vpack.c.b16 %v122, %v122
    %v129 = vpack.c.b16 %v123, %v123
    %v130 = vpack.c.b16 %v124, %v124
    %v131 = vpack.c.b16 %v125, %v125
    %v132 = vpack.c.b16 %v126, %v126
    %v235 = vunpack.c.l.b16 %v18
    %v236 = vunpack.c.l.b16 %v19
    %v237 = vunpack.c.l.b16 %v20
    %v238 = vunpack.c.l.b16 %v21
    %v239 = vunpack.c.l.b16 %v22
    %v240 = vunpack.c.l.b16 %v23
    %v241 = vunpack.c.l.b16 %v24
    %v242 = vunpack.c.l.b16 %v25
    %v243 = vunpack.c.l.b16 %v26
    %v244 = vunpack.c.l.b16 %v27
    %v245 = vunpack.c.l.b16 %v28
    %v246 = vunpack.c.l.b16 %v29
    %v247 = vunpack.c.l.b16 %v30
    %v248 = vunpack.c.l.b16 %v31
    %v249 = vunpack.c.l.b16 %v32
    %v250 = vunpack.c.l.b16 %v33
    %v251 = vunpack.c.l.b16 %v34
    %v252 = vunpack.c.l.b16 %v35
    %v253 = vunpack.c.l.b16 %v36
    %v254 = vunpack.c.l.b16 %v37
    %v255 = vunpack.c.l.b16 %v38
    %v256 = vunpack.c.l.b16 %v39
    %v257 = vunpack.c.l.b16 %v40
    %v258 = vunpack.c.l.b16 %v41
    %v259 = vunpack.c.l.b16 %v42
    %v260 = vunpack.c.l.b16 %v43
    %v261 = vunpack.c.l.b16 %v44
    %v262 = vunpack.c.l.b16 %v45
    %v263 = vunpack.c.l.b16 %v46
    %v264 = vunpack.c.l.b16 %v47
    %v265 = vunpack.c.l.b16 %v48
    %v266 = vunpack.c.l.b16 %v49
    %v267 = vunpack.c.l.b16 %v50
    %v268 = vunpack.c.l.b16 %v51
    %v269 = vunpack.c.l.b16 %v52
    %v270 = vunpack.c.l.b16 %v53
    %v271 = vunpack.c.l.b16 %v54
    %v272 = vunpack.c.l.b16 %v55
    %v273 = vunpack.c.l.b16 %v56
    %v274 = vunpack.c.l.b16 %v57
    %v275 = vunpack.c.l.b16 %v58
    %v276 = vunpack.c.l.b16 %v59
    %v277 = vunpack.c.l.b16 %v60
    %v278 = vunpack.c.l.b16 %v61
    %v279 = vunpack.c.l.b16 %v62
    %v280 = vunpack.c.l.b16 %v63
    %v281 = vunpack.c.l.b16 %v64
    %v282 = vunpack.c.l.b16 %v65
    %v283 = vunpack.c.l.b16 %v66
    %v284 = vunpack.c.l.b16 %v67
    %v285 = vunpack.c.l.b16 %v68
    %v286 = vunpack.c.l.b16 %v69
    %v287 = vunpack.c.l.b16 %v70
    %v288 = vunpack.c.l.b16 %v71
    %v289 = vunpack.c.l.b16 %v72
    %v290 = vunpack.c.l.b16 %v73
    %v291 = vunpack.c.l.b16 %v74
    %v292 = vunpack.c.l.b16 %v75
    %v293 = vunpack.c.l.b16 %v76
    %v294 = vunpack.c.l.b16 %v77
    %v295 = vunpack.c.l.b16 %v78
    %v296 = vunpack.c.l.b16 %v79
    %v297 = vunpack.c.l.b16 %v80
    %v298 = vunpack.c.l.b16 %v81
    %v299 = vunpack.c.l.b16 %v82
    %v300 = vunpack.c.l.b16 %v83
    %v301 = vunpack.c.l.b16 %v84
    %v302 = vunpack.c.l.b16 %v85
    %v303 = vunpack.c.l.b16 %v86
    %v304 = vunpack.c.l.b16 %v87
    %v305 = vunpack.c.l.b16 %v88
    %v306 = vunpack.c.l.b16 %v89
    %v307 = vunpack.c.l.b16 %v90
    %v308 = vunpack.c.l.b16 %v91
    %v309 = vunpack.c.l.b16 %v92
    %v310 = vunpack.c.l.b16 %v93
    %v311 = vunpack.c.l.b16 %v94
    %v312 = vunpack.c.l.b16 %v95
    %v313 = vunpack.c.l.b16 %v96
    %v314 = vunpack.c.l.b16 %v97
    %v315 = vunpack.c.l.b16 %v98
    %v316 = vunpack.c.l.b16 %v99
    %v317 = vunpack.c.l.b16 %v100
    %v318 = vunpack.c.l.b16 %v101
    %v319 = vunpack.c.l.b16 %v102
    %v320 = vunpack.c.l.b16 %v103
    %v321 = vunpack.c.l.b16 %v104
    %v322 = vunpack.c.l.b16 %v105
    %v323 = vunpack.c.l.b16 %v106
    %v324 = vunpack.c.l.b16 %v107
    %v325 = vunpack.c.l.b16 %v108
    %v326 = vunpack.c.l.b16 %v109
    %v327 = vunpack.c.l.b16 %v110
    %v328 = vunpack.c.l.b16 %v111
    %v329 = vunpack.c.l.b16 %v112
    %v330 = vunpack.c.l.b16 %v113
    %v331 = vpack.c.b16 %v236, %v235
    %v332 = vpack.c.b16 %v238, %v237
    %v333 = vpack.c.b16 %v240, %v239
    %v334 = vpack.c.b16 %v242, %v241
    %v335 = vpack.c.b16 %v244, %v243
    %v336 = vpack.c.b16 %v246, %v245
    %v337 = vpack.c.b16 %v248, %v247
    %v338 = vpack.c.b16 %v250, %v249
    %v339 = vpack.c.b16 %v252, %v251
    %v340 = vpack.c.b16 %v254, %v253
    %v341 = vpack.c.b16 %v256, %v255
    %v342 = vpack.c.b16 %v258, %v257
    %v343 = vpack.c.b16 %v260, %v259
    %v344 = vpack.c.b16 %v262, %v261
    %v345 = vpack.c.b16 %v264, %v263
    %v346 = vpack.c.b16 %v266, %v265
    %v347 = vpack.c.b16 %v268, %v267
    %v348 = vpack.c.b16 %v270, %v269
    %v349 = vpack.c.b16 %v272, %v271
    %v350 = vpack.c.b16 %v274, %v273
    %v351 = vpack.c.b16 %v276, %v275
    %v352 = vpack.c.b16 %v278, %v277
    %v353 = vpack.c.b16 %v280, %v279
    %v354 = vpack.c.b16 %v282, %v281
    %v355 = vpack.c.b16 %v284, %v283
    %v356 = vpack.c.b16 %v286, %v285
    %v357 = vpack.c.b16 %v288, %v287
    %v358 = vpack.c.b16 %v290, %v289
    %v359 = vpack.c.b16 %v292, %v291
    %v360 = vpack.c.b16 %v294, %v293
    %v361 = vpack.c.b16 %v296, %v295
    %v362 = vpack.c.b16 %v298, %v297
    %v363 = vpack.c.b16 %v300, %v299
    %v364 = vpack.c.b16 %v302, %v301
    %v365 = vpack.c.b16 %v304, %v303
    %v366 = vpack.c.b16 %v306, %v305
    %v367 = vpack.c.b16 %v308, %v307
    %v368 = vpack.c.b16 %v310, %v309
    %v369 = vpack.c.b16 %v312, %v311
    %v370 = vpack.c.b16 %v314, %v313
    %v371 = vpack.c.b16 %v316, %v315
    %v372 = vpack.c.b16 %v318, %v317
    %v373 = vpack.c.b16 %v320, %v319
    %v374 = vpack.c.b16 %v322, %v321
    %v375 = vpack.c.b16 %v324, %v323
    %v376 = vpack.c.b16 %v326, %v325
    %v377 = vpack.c.b16 %v328, %v327
    %v378 = vpack.c.b16 %v330, %v329
    %427 = vmatpush.bf16.msra.mxu0 %v338
    %428 = vmatpush.bf16.msra.mxu0 %v337
    %429 = vmatpush.bf16.msra.mxu0 %v336
    %430 = vmatpush.bf16.msra.mxu0 %v335
    %431 = vmatpush.bf16.msra.mxu0 %v334
    %432 = vmatpush.bf16.msra.mxu0 %v333
    %433 = vmatpush.bf16.msra.mxu0 %v332
    %434 = vmatpush.bf16.msra.mxu0 %v331
    %435 = vmatmul.bf16.gmra.mxu0 %v127
    %v436 = vpop.f32.mrf.mxu0
    %v437 = vadd.f32 %v116, %v436
    %v438 = vpop.f32.mrf.mxu0
    %439 = vdwg.mxu0
    %440 = vmatpush.bf16.msra.mxu0 %v346
    %441 = vmatpush.bf16.msra.mxu0 %v345
    %442 = vmatpush.bf16.msra.mxu0 %v344
    %443 = vmatpush.bf16.msra.mxu0 %v343
    %444 = vmatpush.bf16.msra.mxu0 %v342
    %445 = vmatpush.bf16.msra.mxu0 %v341
    %446 = vmatpush.bf16.msra.mxu0 %v340
    %447 = vmatpush.bf16.msra.mxu0 %v339
    %448 = vmatmul.bf16.gmra.mxu0 %v128
    %v449 = vpop.f32.mrf.mxu0
    %v450 = vadd.f32 %v437, %v449
    %v451 = vpop.f32.mrf.mxu0
    %452 = vdwg.mxu0
    %453 = vmatpush.bf16.msra.mxu0 %v354
    %454 = vmatpush.bf16.msra.mxu0 %v353
    %455 = vmatpush.bf16.msra.mxu0 %v352
    %456 = vmatpush.bf16.msra.mxu0 %v351
    %457 = vmatpush.bf16.msra.mxu0 %v350
    %458 = vmatpush.bf16.msra.mxu0 %v349
    %459 = vmatpush.bf16.msra.mxu0 %v348
    %460 = vmatpush.bf16.msra.mxu0 %v347
    %461 = vmatmul.bf16.gmra.mxu0 %v129
    %v462 = vpop.f32.mrf.mxu0
    %v463 = vadd.f32 %v450, %v462
    %v464 = vpop.f32.mrf.mxu0
    %465 = vdwg.mxu0
    %466 = vmatpush.bf16.msra.mxu0 %v362
    %467 = vmatpush.bf16.msra.mxu0 %v361
    %468 = vmatpush.bf16.msra.mxu0 %v360
    %469 = vmatpush.bf16.msra.mxu0 %v359
    %470 = vmatpush.bf16.msra.mxu0 %v358
    %471 = vmatpush.bf16.msra.mxu0 %v357
    %472 = vmatpush.bf16.msra.mxu0 %v356
    %473 = vmatpush.bf16.msra.mxu0 %v355
    %474 = vmatmul.bf16.gmra.mxu0 %v130
    %v475 = vpop.f32.mrf.mxu0
    %v476 = vadd.f32 %v463, %v475
    %v477 = vpop.f32.mrf.mxu0
    %478 = vdwg.mxu0
    %479 = vmatpush.bf16.msra.mxu0 %v370
    %480 = vmatpush.bf16.msra.mxu0 %v369
    %481 = vmatpush.bf16.msra.mxu0 %v368
    %482 = vmatpush.bf16.msra.mxu0 %v367
    %483 = vmatpush.bf16.msra.mxu0 %v366
    %484 = vmatpush.bf16.msra.mxu0 %v365
    %485 = vmatpush.bf16.msra.mxu0 %v364
    %486 = vmatpush.bf16.msra.mxu0 %v363
    %487 = vmatmul.bf16.gmra.mxu0 %v131
    %v488 = vpop.f32.mrf.mxu0
    %v489 = vadd.f32 %v476, %v488
    %v490 = vpop.f32.mrf.mxu0
    %491 = vdwg.mxu0
    %492 = vmatpush.bf16.msra.mxu0 %v378
    %493 = vmatpush.bf16.msra.mxu0 %v377
    %494 = vmatpush.bf16.msra.mxu0 %v376
    %495 = vmatpush.bf16.msra.mxu0 %v375
    %496 = vmatpush.bf16.msra.mxu0 %v374
    %497 = vmatpush.bf16.msra.mxu0 %v373
    %498 = vmatpush.bf16.msra.mxu0 %v372
    %499 = vmatpush.bf16.msra.mxu0 %v371
    %500 = vmatmul.bf16.gmra.mxu0 %v132
    %v501 = vpop.f32.mrf.mxu0
    %v502 = vadd.f32 %v489, %v501
    %v503 = vpop.f32.mrf.mxu0
    %504 = vdwg.mxu0
    %v505 = vpack.c.bf16 %v502, %v502
    %506 = vst [vmem:[#allocation2] sm:$0xf] %v505
    // Predicated region
    $region14: #{image_patch_embed.1} parent=1 // pred_check
      _
    $region15: #{image_patch_embed.1} parent=1 // pred_check_branch
      %508 = sbr.rel (0) target = $region17
    $region16: #{image_patch_embed.1} parent=1 // pred_region
      %510 = vsyncadd [#allocation3], 0
      %s512 = sshll.u32 [#allocation2], 4
      %s513 = int_to_ptr.vmem [resolvable:$true] %s512
      %s514 = sshll.u32 %s3, 4
      %s515 = int_to_ptr.hbm [resolvable:$true] %s514
      %517 = dma.vmem_to_hbm [thread:$0]  %s513, 64, %s515, [#allocation3]
    $region17: #{image_patch_embed.1} parent=1 // pred_fallthru
      _
    // Predicated region
    $region18: #{image_patch_embed.1} parent=1 // pred_check
      _
    $region19: #{image_patch_embed.1} parent=1 // pred_check_branch
      %519 = sbr.rel (0) target = $region21
    $region20: #{image_patch_embed.1} parent=1 // pred_region
      %521 = dma.done [#allocation3], 64
    $region21: #{image_patch_embed.1} parent=1 // pred_fallthru
      _
    %522 = vsyncpa [#allocation3], 1

</llo_original>
